<compile_context>
chip_gen: v6e
topology: v6e:2x2x1
jax: 0.10.0
libtpu: 0.0.40
codegen_flags: <defaults>
</compile_context>

<pallas_src>
import functools

import jax
import jax.numpy as jnp
from jax.experimental import pallas as pl
from jax.experimental.pallas import tpu as pltpu

_NEG = -1e30                              # finite stand-in for -inf (exp underflows to 0)
_VMEM_BUDGET_PER_BUF = 6 * 1024 * 1024    # one (f32 + int8) input block, single-buffered
_MAX_CHUNK = 65536                        # lane cap, keeps in-kernel temporaries bounded


def _round_up(x, m):
    return (x + m - 1) // m * m


def _cdiv(a, b):
    return (a + b - 1) // b


def _ce_kernel(x_ref, p_ref, m_out_ref, l_out_ref, m_sc, l_sc, *, split):
    """Online logsumexp over one (tb, chunk) tile; (m, l) state in VMEM scratch."""
    c = pl.program_id(2)

    @pl.when(c == 0)
    def _init():
        m_sc[...] = jnp.full_like(m_sc, _NEG)
        l_sc[...] = jnp.zeros_like(l_sc)

    x = x_ref[...]                          # (tb, chunk) f32 or bf16
    if x.dtype != jnp.float32:
        x = x.astype(jnp.float32)           # bf16 inputs upcast in-kernel (review item 8)
    p = p_ref[...]                          # (tb, chunk) int8 in {-1, 0, +1}; logit = p * x

    if split:
        # positive branch only: keep (label == +1 & attn != 0)  <=>  packed == -1.
        # The "negative" branch is fully masked for +/-1 labels -> score contribution 0.
        keep = p == -1
        lg = jnp.where(keep, -x, _NEG)
    else:
        keep = p != 0
        lg = jnp.where(keep, p.astype(jnp.float32) * x, _NEG)

    m_prev = m_sc[...]                                               # (tb, 1)
    m_new = jnp.maximum(m_prev, jnp.max(lg, axis=-1, keepdims=True))
    # Multiply the summand by the keep mask: fully-masked chunks and the OOB tail of
    # the unpadded f32 stream contribute exactly zero (no reliance on exp underflow).
    e = jnp.where(keep, jnp.exp(lg - m_new), 0.0)
    l_sc[...] = l_sc[...] * jnp.exp(m_prev - m_new) + jnp.sum(e, axis=-1, keepdims=True)
    m_sc[...] = m_new

    @pl.when(c == pl.num_programs(2) - 1)
    def _finalize():
        # Lane-dense (1, tb, 128) stores.  The 128->1 collapse, the single zero-logit
        # fold and the cross-split merge happen once, outside the kernel.
        m_out_ref[...] = jnp.broadcast_to(m_sc[...], m_out_ref.shape)
        l_out_ref[...] = jnp.broadcast_to(l_sc[...], l_out_ref.shape)


@functools.partial(jax.jit, static_argnames=("reduction", "split_positive_negative"))
def cross_entropy_loss(outputs, labels, attention_matrix=None, *,
                       reduction="mean", split_positive_negative=False):
    """Pallas TPU implementation of CrossEntropyLoss.forward.

    Like the PyTorch module, `reduction` is accepted for interface parity but the
    forward always returns the batch mean.  Labels are assumed to be +/-1 (the
    module's pairwise-mention convention).
    """
    B, S, T = outputs.shape
    N = S * T

    if outputs.dtype not in (jnp.float32, jnp.bfloat16):
        outputs = outputs.astype(jnp.float32)
    x2 = outputs.reshape(B, N)

    # Single packed int8 side stream: packed = -label where attention != 0 else 0,
    # i.e. logit = packed * outputs.  One fused wrapper op writing 1 B/elem.
    # TODO(synk): labels equal to 0 with attention != 0 cannot be represented by the
    # packed {-1,0,+1} encoding; that case would need a separate label stream.
    neg_lab = (-labels).astype(jnp.int8).reshape(B, N)
    if attention_matrix is None:
        packed = neg_lab
    else:
        packed = jnp.where(attention_matrix.reshape(B, N) != 0, neg_lab, jnp.int8(0))

    # ---- batch tiling --------------------------------------------------------
    if B >= 32:
        tb = 32                       # int8-native (32, 128) tile
    else:
        tb = B                        # full-dim block (legal for any size/dtype)
    nb = _cdiv(B, tb)

    # ---- chunking along the flattened S*S axis (lane-dense) ------------------
    n128 = _round_up(N, 128)
    cap = (_VMEM_BUDGET_PER_BUF // (tb * 5)) // 128 * 128     # 4 B f32 + 1 B int8
    cap = max(128, min(cap, _MAX_CHUNK))
    if n128 <= cap:
        # One chunk per row: use the exact (full-dim) width -> no column padding.
        chunk, n_chunks = N, 1
    else:
        chunk = cap
        n_chunks = _cdiv(n128, chunk)
        chunk = _round_up(_cdiv(n128, n_chunks), 128)          # balance chunk sizes
        n_chunks = _cdiv(n128, chunk)

    # ---- v7x dual-TensorCore: split the reduction axis when there is only one
    # batch tile (harmless on single-TC v5e/v6e, where it just reorders the loop).
    nsplit = 2 if (nb == 1 and n_chunks >= 2) else 1
    ncs = _cdiv(n_chunks, nsplit)
    n_pad = chunk * ncs * nsplit

    if n_pad != N:
        # 1-byte stream only; padded columns are 0 -> masked.
        packed = jnp.pad(packed, ((0, 0), (0, n_pad - N)))

    rows = nb * tb
    last_col_block = n_chunks - 1     # clamp: never start a DMA past the f32 extent

    def x_map(s, bi, c):
        return (bi, jnp.minimum(s * ncs + c, last_col_block))

    def p_map(s, bi, c):
        return (bi, s * ncs + c)

    def o_map(s, bi, c):
        return (s, bi, 0)

    kernel = functools.partial(_ce_kernel, split=bool(split_positive_negative))
    out_sds = jax.ShapeDtypeStruct((nsplit, rows, 128), jnp.float32)
    out_spec = pl.BlockSpec((1, tb, 128), o_map)

    m_res, l_res = pl.pallas_call(
        kernel,
        out_shape=(out_sds, out_sds),
        grid_spec=pltpu.PrefetchScalarGridSpec(
            num_scalar_prefetch=0,
            grid=(nsplit, nb, ncs),
            in_specs=[pl.BlockSpec((tb, chunk), x_map),
                      pl.BlockSpec((tb, chunk), p_map)],
            out_specs=(out_spec, out_spec),
            scratch_shapes=[pltpu.VMEM((tb, 1), jnp.float32),
                            pltpu.VMEM((tb, 1), jnp.float32)],
        ),
        compiler_params=pltpu.CompilerParams(
            dimension_semantics=("parallel", "parallel", "arbitrary"),
            vmem_limit_bytes=32 * 1024 * 1024,
        ),
        cost_estimate=pl.CostEstimate(
            flops=6 * B * N,
            transcendentals=B * N,
            bytes_accessed=B * N * x2.dtype.itemsize + B * n_pad
                           + 2 * nsplit * rows * 128 * 4,
        ),
    )(x2, packed)

    # Final combine on tiny arrays: merge splits, fold in the single appended zero
    # logit, collapse to per-batch scores, mean over the batch.
    m = m_res[:, :B, 0]               # (nsplit, B) -- all 128 lanes are identical
    l = l_res[:, :B, 0]
    M = jnp.maximum(jnp.max(m, axis=0), 0.0)                   # zero logit fold
    L = jnp.sum(l * jnp.exp(m - M[None, :]), axis=0) + jnp.exp(-M)
    scores = M + jnp.log(L)
    return jnp.mean(scores)


def _reference(outputs, labels, attn, *, split=False):
    """Pure-JAX reference mirroring the PyTorch forward (incl. split-path aliasing)."""
    B, S, T = outputs.shape
    logits = jnp.where(attn == 0, -jnp.inf, -labels * outputs)

    def lse_with_zero(lg):
        extra = jnp.zeros((B, S, 1), lg.dtype).at[:, 1:, :].set(-jnp.inf)
        full = jnp.concatenate([lg, extra], axis=-1).reshape(B, -1)
        return jax.scipy.special.logsumexp(full, axis=-1)

    if split:
        pos = jnp.where(labels == -1, -jnp.inf, logits)
        neg = jnp.where(labels == 1, -jnp.inf, pos)    # PyTorch in-place aliasing
        scores = lse_with_zero(pos) + lse_with_zero(neg)
    else:
        scores = lse_with_zero(logits)
    return jnp.mean(scores)


if __name__ == "__main__":
    key = jax.random.PRNGKey(0)

    def make_inputs(k, B, S):
        k1, k2, k3 = jax.random.split(k, 3)
        outputs = jax.random.normal(k1, (B, S, S), dtype=jnp.float32)
        labels = jnp.where(jax.random.bernoulli(k2, 0.5, (B, S, S)), 1.0, -1.0
                           ).astype(jnp.float32)
        attn = jax.random.bernoulli(k3, 0.8, (B, S, S)).astype(jnp.float32)
        return outputs, labels, attn

    # tiny full-dim / non-128-wide single chunk / batch-tiled (nb=2, partial block)
    # / multi-chunk + dual-split reduction + clamped pad chunk + padded side stream
    configs = [(2, 8), (5, 70), (33, 16), (3, 413)]
    keys = jax.random.split(key, len(configs))

    for k, (B, S) in zip(keys, configs):
        outputs, labels, attn = make_inputs(k, B, S)
        for split in (False, True):
            loss = cross_entropy_loss(outputs, labels, attn,
                                      split_positive_negative=split)
            jax.block_until_ready(loss)
            expected = _reference(outputs, labels, attn, split=split)
            assert jnp.allclose(loss, expected, atol=1e-3, rtol=1e-4), (
                B, S, split, float(loss), float(expected))

    print("KERNEL_OK")
</pallas_src>

<mosaic_0001>
module attributes {stable_mosaic.version = 11 : i64} {
  func.func @_ce_kernel(%arg0: i32, %arg1: i32, %arg2: i32, %arg3: memref<2x64xf32, #tpu.memory_space<vmem>>, %arg4: memref<2x64xi8, #tpu.memory_space<vmem>>, %arg5: memref<1x2x128xf32, #tpu.memory_space<vmem>>, %arg6: memref<1x2x128xf32, #tpu.memory_space<vmem>>, %arg7: memref<2x1xf32, #tpu.memory_space<vmem>>, %arg8: memref<2x1xf32, #tpu.memory_space<vmem>>) attributes {dimension_semantics = [#tpu.dimension_semantics<parallel>, #tpu.dimension_semantics<parallel>, #tpu.dimension_semantics<arbitrary>], iteration_bounds = array<i64: 1, 1, 1>, scalar_prefetch = 0 : i64, scratch_operands = 2 : i64, tpu.core_type = #tpu.core_type<tc>, window_params = [{transform_indices = @transform_0, window_bounds = array<i64: 2, 64>}, {transform_indices = @transform_1, window_bounds = array<i64: 2, 64>}, {transform_indices = @transform_2, window_bounds = array<i64: 1, 2, 128>}, {transform_indices = @transform_3, window_bounds = array<i64: 1, 2, 128>}]} {
    %c0_i32 = arith.constant 0 : i32
    %0 = arith.cmpi eq, %arg2, %c0_i32 : i32
    %1 = arith.extui %0 : i1 to i32
    %c0_i32_0 = arith.constant 0 : i32
    %2 = arith.cmpi ne, %1, %c0_i32_0 : i32
    scf.if %2 {
      %cst_17 = arith.constant -1.000000e+30 : f32
      %32 = vector.broadcast %cst_17 : f32 to vector<2x1xf32>
      %c0_18 = arith.constant 0 : index
      %c0_19 = arith.constant 0 : index
      %33 = vector.load %arg7[%c0_18, %c0_19] : memref<2x1xf32, #tpu.memory_space<vmem>>, vector<2x1xf32>
      tpu.vector_store %arg7[%c0_18, %c0_19], %32 {strides = array<i32>} : memref<2x1xf32, #tpu.memory_space<vmem>>, vector<2x1xf32>,
      %cst_20 = arith.constant 0.000000e+00 : f32
      %34 = vector.broadcast %cst_20 : f32 to vector<2x1xf32>
      %c0_21 = arith.constant 0 : index
      %c0_22 = arith.constant 0 : index
      %35 = vector.load %arg8[%c0_21, %c0_22] : memref<2x1xf32, #tpu.memory_space<vmem>>, vector<2x1xf32>
      tpu.vector_store %arg8[%c0_21, %c0_22], %34 {strides = array<i32>} : memref<2x1xf32, #tpu.memory_space<vmem>>, vector<2x1xf32>,
    } else {
    }
    %c0 = arith.constant 0 : index
    %c0_1 = arith.constant 0 : index
    %3 = vector.load %arg3[%c0, %c0_1] : memref<2x64xf32, #tpu.memory_space<vmem>>, vector<2x64xf32>
    %c0_2 = arith.constant 0 : index
    %c0_3 = arith.constant 0 : index
    %4 = vector.load %arg4[%c0_2, %c0_3] : memref<2x64xi8, #tpu.memory_space<vmem>>, vector<2x64xi8>
    %c0_i8 = arith.constant 0 : i8
    %5 = vector.broadcast %c0_i8 : i8 to vector<2x64xi8>
    %6 = arith.cmpi ne, %4, %5 : vector<2x64xi8>
    %7 = arith.sitofp %4 : vector<2x64xi8> to vector<2x64xf32>
    %8 = arith.mulf %7, %3 : vector<2x64xf32>
    %cst = arith.constant -1.000000e+30 : f32
    %9 = vector.broadcast %cst : f32 to vector<2x64xf32>
    %10 = arith.select %6, %8, %9 : vector<2x64xi1>, vector<2x64xf32>
    %c0_4 = arith.constant 0 : index
    %c0_5 = arith.constant 0 : index
    %11 = vector.load %arg7[%c0_4, %c0_5] : memref<2x1xf32, #tpu.memory_space<vmem>>, vector<2x1xf32>
    %cst_6 = arith.constant dense<0xFF800000> : vector<2xf32>
    %12 = vector.multi_reduction <maximumf>, %10, %cst_6 [1] : vector<2x64xf32> to vector<2xf32>
    %13 = vector.shape_cast %12 : vector<2xf32> to vector<2x1xf32>
    %14 = arith.maximumf %11, %13 : vector<2x1xf32>
    %15 = vector.broadcast %14 : vector<2x1xf32> to vector<2x64xf32>
    %16 = arith.subf %10, %15 : vector<2x64xf32>
    %17 = math.exp %16 : vector<2x64xf32>
    %cst_7 = arith.constant 0.000000e+00 : f32
    %18 = vector.broadcast %cst_7 : f32 to vector<2x64xf32>
    %19 = arith.select %6, %17, %18 : vector<2x64xi1>, vector<2x64xf32>
    %c0_8 = arith.constant 0 : index
    %c0_9 = arith.constant 0 : index
    %20 = vector.load %arg8[%c0_8, %c0_9] : memref<2x1xf32, #tpu.memory_space<vmem>>, vector<2x1xf32>
    %21 = arith.subf %11, %14 : vector<2x1xf32>
    %22 = math.exp %21 : vector<2x1xf32>
    %23 = arith.mulf %20, %22 : vector<2x1xf32>
    %cst_10 = arith.constant dense<0.000000e+00> : vector<2xf32>
    %24 = vector.multi_reduction <add>, %19, %cst_10 [1] : vector<2x64xf32> to vector<2xf32>
    %25 = vector.shape_cast %24 : vector<2xf32> to vector<2x1xf32>
    %26 = arith.addf %23, %25 : vector<2x1xf32>
    %c0_11 = arith.constant 0 : index
    %c0_12 = arith.constant 0 : index
    %27 = vector.load %arg8[%c0_11, %c0_12] : memref<2x1xf32, #tpu.memory_space<vmem>>, vector<2x1xf32>
    tpu.vector_store %arg8[%c0_11, %c0_12], %26 {strides = array<i32>} : memref<2x1xf32, #tpu.memory_space<vmem>>, vector<2x1xf32>,
    %c0_13 = arith.constant 0 : index
    %c0_14 = arith.constant 0 : index
    %28 = vector.load %arg7[%c0_13, %c0_14] : memref<2x1xf32, #tpu.memory_space<vmem>>, vector<2x1xf32>
    tpu.vector_store %arg7[%c0_13, %c0_14], %14 {strides = array<i32>} : memref<2x1xf32, #tpu.memory_space<vmem>>, vector<2x1xf32>,
    %c0_i32_15 = arith.constant 0 : i32
    %29 = arith.cmpi eq, %arg2, %c0_i32_15 : i32
    %30 = arith.extui %29 : i1 to i32
    %c0_i32_16 = arith.constant 0 : i32
    %31 = arith.cmpi ne, %30, %c0_i32_16 : i32
    scf.if %31 {
      %c0_17 = arith.constant 0 : index
      %c0_18 = arith.constant 0 : index
      %32 = vector.load %arg7[%c0_17, %c0_18] : memref<2x1xf32, #tpu.memory_space<vmem>>, vector<2x1xf32>
      %33 = vector.shape_cast %32 : vector<2x1xf32> to vector<1x2x1xf32>
      %34 = vector.broadcast %33 : vector<1x2x1xf32> to vector<1x2x128xf32>
      %c0_19 = arith.constant 0 : index
      %c0_20 = arith.constant 0 : index
      %c0_21 = arith.constant 0 : index
      %35 = vector.load %arg5[%c0_19, %c0_20, %c0_21] : memref<1x2x128xf32, #tpu.memory_space<vmem>>, vector<1x2x128xf32>
      tpu.vector_store %arg5[%c0_19, %c0_20, %c0_21], %34 {strides = array<i32>} : memref<1x2x128xf32, #tpu.memory_space<vmem>>, vector<1x2x128xf32>,
      %c0_22 = arith.constant 0 : index
      %c0_23 = arith.constant 0 : index
      %36 = vector.load %arg8[%c0_22, %c0_23] : memref<2x1xf32, #tpu.memory_space<vmem>>, vector<2x1xf32>
      %37 = vector.shape_cast %36 : vector<2x1xf32> to vector<1x2x1xf32>
      %38 = vector.broadcast %37 : vector<1x2x1xf32> to vector<1x2x128xf32>
      %c0_24 = arith.constant 0 : index
      %c0_25 = arith.constant 0 : index
      %c0_26 = arith.constant 0 : index
      %39 = vector.load %arg6[%c0_24, %c0_25, %c0_26] : memref<1x2x128xf32, #tpu.memory_space<vmem>>, vector<1x2x128xf32>
      tpu.vector_store %arg6[%c0_24, %c0_25, %c0_26], %38 {strides = array<i32>} : memref<1x2x128xf32, #tpu.memory_space<vmem>>, vector<1x2x128xf32>,
    } else {
    }
    return
  }
  func.func @transform_0(%arg0: i32, %arg1: i32, %arg2: i32) -> (i32, i32) {
    %c1_i32 = arith.constant 1 : i32
    %0 = arith.muli %arg0, %c1_i32 : i32
    %1 = arith.addi %0, %arg2 : i32
    %c0_i32 = arith.constant 0 : i32
    %2 = arith.minsi %1, %c0_i32 : i32
    %c0_i32_0 = arith.constant 0 : i32
    return %arg1, %2 : i32, i32
  }
  func.func @transform_1(%arg0: i32, %arg1: i32, %arg2: i32) -> (i32, i32) {
    %c1_i32 = arith.constant 1 : i32
    %0 = arith.muli %arg0, %c1_i32 : i32
    %1 = arith.addi %0, %arg2 : i32
    %c0_i32 = arith.constant 0 : i32
    return %arg1, %1 : i32, i32
  }
  func.func @transform_2(%arg0: i32, %arg1: i32, %arg2: i32) -> (i32, i32, i32) {
    %c0_i32 = arith.constant 0 : i32
    %c0_i32_0 = arith.constant 0 : i32
    return %arg0, %arg1, %c0_i32 : i32, i32, i32
  }
  func.func @transform_3(%arg0: i32, %arg1: i32, %arg2: i32) -> (i32, i32, i32) {
    %c0_i32 = arith.constant 0 : i32
    %c0_i32_0 = arith.constant 0 : i32
    return %arg0, %arg1, %c0_i32 : i32, i32, i32
  }
}

</mosaic_0001>

<llo_original>
// kernel: cross_entropy_loss.1
$region0: #{cross_entropy_loss.1}
  #allocation0 [shape = 'u32[]', space=smem, size = 0x4, offset = 0x4, fixed_abs, tag = 'smem constant byte address 0x4 - core index']
  #allocation1 [shape = 'u32[144,128]{1,0:T(1,128)}', space=vmem, size = 0x12000, scoped, tag = 'internal scratch']
  #allocation2 [shape = 'f32[2,1]{1,0:T(2,128)}', space=vmem, size = 0x400, scoped, tag = 'scratch operand']
  #allocation3 [shape = 'f32[2,1]{1,0:T(2,128)}', space=vmem, size = 0x400, scoped, tag = 'scratch operand']
  %s0 = inlined_call_operand.vmem [shape: f32[2,64], index: 0, kind: input, shape index: {}]
  %s1 = inlined_call_operand.vmem [shape: s8[2,64], index: 1, kind: input, shape index: {}]
  %s2 = inlined_call_operand.vmem [shape: f32[1,2,128], index: 2, kind: output, shape index: {0}]
  %s3 = inlined_call_operand.vmem [shape: f32[1,2,128], index: 3, kind: output, shape index: {1}]
  %4 = xla_tuple %s2, %s3
  %s5 = sld [smem:[#allocation0]]
  $region34: #{cross_entropy_loss.1} parent=0
    _
  %s7 = ssub.s32 1, %s5
  %s8 = scalar_select 0, %s7, %s5
  // Predicated region
  $region2: #{cross_entropy_loss.1} parent=0 // pred_check
    _
  $region3: #{cross_entropy_loss.1} parent=0 // pred_check_branch
    %10 = sbr.rel (0) target = $region5
  $region4: #{cross_entropy_loss.1} parent=0 // pred_region
    %s11 = sadd.s32 0, 0
    %p12 = scmp.lt.s32.totalorder %s11, 0
    %s13 = scalar_select %p12, %s11, 0
    %p14 = scmp.lt.s32.totalorder %s13, 0
    %s15 = scalar_select %p14, %s13, 0
    %s16 = smul.addr %s15, 2
    %s17 = scalar_lea.vmem %s0, %s16
    %s18 = sadd.s32 0, 0
    %p19 = scmp.lt.s32.totalorder %s18, 0
    %s20 = scalar_select %p19, %s18, 0
  $region5: #{cross_entropy_loss.1} parent=0 // pred_fallthru
    _
  // Predicated region
  $region6: #{cross_entropy_loss.1} parent=0 // pred_check
    _
  $region7: #{cross_entropy_loss.1} parent=0 // pred_check_branch
    %22 = sbr.rel (0) target = $region9
  $region8: #{cross_entropy_loss.1} parent=0 // pred_region
    %s23 = sadd.s32 0, 0
    %p24 = scmp.lt.s32.totalorder %s23, 0
    %s25 = scalar_select %p24, %s23, 0
    %s26 = scalar_lea.vmem %s1, %s25
    %s27 = sadd.s32 0, 0
  $region9: #{cross_entropy_loss.1} parent=0 // pred_fallthru
    _
  %s28 = sadd.s32 0, 0
  %p29 = scmp.lt.s32.totalorder %s28, 0
  %s30 = scalar_select %p29, %s28, 0
  %p31 = scmp.lt.s32.totalorder %s30, 0
  %s32 = scalar_select %p31, %s30, 0
  %s33 = smul.addr %s32, 2
  %s34 = scalar_lea.vmem %s0, %s33
  %s35 = sadd.s32 0, 0
  %p36 = scmp.lt.s32.totalorder %s35, 0
  %s37 = scalar_select %p36, %s35, 0
  %s38 = scalar_lea.vmem %s1, %s37
  %s39 = sadd.s32 0, 0
  %p40 = scmp.lt.s32.totalorder %s39, 0
  %s41 = scalar_select %p40, %s39, 0
  %p42 = scmp.lt.s32.totalorder %s41, 0
  %s43 = scalar_select %p42, %s41, 0
  %s44 = smul.addr %s43, 2
  %s45 = scalar_lea.vmem %s0, %s44
  %s46 = sadd.s32 0, 0
  %p47 = scmp.lt.s32.totalorder %s46, 0
  %s48 = scalar_select %p47, %s46, 0
  %s49 = sadd.s32 0, 0
  %p50 = scmp.lt.s32.totalorder %s49, 0
  %s51 = scalar_select %p50, %s49, 0
  %s52 = scalar_lea.vmem %s1, %s51
  %s53 = sadd.s32 0, 0
  %p56 = scmp.eq.s32.totalorder 0, 0
  // Predicated region
  $region10: #{cross_entropy_loss.1} parent=0 // pred_check
    %p57 = pneg %p56
  $region11: #{cross_entropy_loss.1} parent=0 // pred_check_branch
    %59 = sbr.rel (%p57) target = $region13
  $region12: #{cross_entropy_loss.1} parent=0 // pred_region
    %vm60 = vcmask 1024
    %61 = vst.msk [vmem:[#allocation2] sm:$0x3] %vm60, -1e+30
    %62 = vst.msk [vmem:[#allocation3] sm:$0x3] %vm60, 0.0
  $region13: #{cross_entropy_loss.1} parent=0 // pred_fallthru
    _
  %v63 = vld [vmem:[%s45] sm:$0x3]
  %v64 = vld [vmem:[%s52] sm:$0x1]
  %vm65 = vnez %v64
  %v66 = vunpack.c.0.s8 %v64
  %v67 = vcvt.s32.f32 %v66
  %v68 = vmul.f32 %v67, %v63
  %v69 = vsel %vm65, 16843009, 0
  %v70 = vunpack.c.0.s8 %v69
  %vm71 = vcmp.ne.s32.totalorder %v70, 0
  %v72 = vsel %vm71, %v68, -1e+30
  %v73 = vld [vmem:[#allocation2] sm:$0x3]
  %vm74 = vcmask 517120
  %v75 = vsel %vm74, %v72, -inf
  %76 = vmax.xlane.f32.xlu0 %v75
  %v77 = vpop.xlane.xlu0 %76
  %v78 = vmax.f32 %v73, %v77
  %80 = vset.pattern.permute.xlu0 0
  %81 = vperm.xlu0 %80, %v78
  %v82 = vpop.permute.xlu0 %81
  %v84 = vsub.f32 %v72, %v82
  %v85 = vmul.f32 %v84, 1.442695
  %v86 = vpow.pop %v85
  %v87 = vsel %vm71, %v86, 0.0
  %v88 = vld [vmem:[#allocation3] sm:$0x3]
  %v89 = vsub.f32 %v73, %v78
  %v90 = vmul.f32 %v89, 1.442695
  %v91 = vpow.pop %v90
  %v92 = vmul.f32 %v88, %v91
  %v93 = vsel %vm74, %v87, 0.0
  %94 = vadd.xlane.f32.xlu0 %v93
  %v95 = vpop.xlane.xlu0 %94
  %v96 = vadd.f32 %v92, %v95
  %vm97 = vcmask 1024
  %98 = vst.msk [vmem:[#allocation3] sm:$0x3] %vm97, %v96
  %99 = vst.msk [vmem:[#allocation2] sm:$0x3] %vm97, %v78
  // Predicated region
  $region14: #{cross_entropy_loss.1} parent=0 // pred_check
    %p100 = pneg %p56
  $region15: #{cross_entropy_loss.1} parent=0 // pred_check_branch
    %102 = sbr.rel (%p100) target = $region17
  $region16: #{cross_entropy_loss.1} parent=0 // pred_region
    %v103 = vld [vmem:[#allocation2] sm:$0x3]
    %105 = vset.pattern.permute.xlu0 0
    %106 = vperm.xlu0 %105, %v103
    %v107 = vpop.permute.xlu0 %106
    %109 = vst [vmem:[%s2] sm:$0x3] %v107
    %v110 = vld [vmem:[#allocation3] sm:$0x3]
    %112 = vset.pattern.permute.xlu0 0
    %113 = vperm.xlu0 %112, %v110
    %v114 = vpop.permute.xlu0 %113
    %116 = vst [vmem:[%s3] sm:$0x3] %v114
  $region17: #{cross_entropy_loss.1} parent=0 // pred_fallthru
    _
  // Predicated region
  $region18: #{cross_entropy_loss.1} parent=0 // pred_check
    _
  $region19: #{cross_entropy_loss.1} parent=0 // pred_check_branch
    %118 = sbr.rel (0) target = $region21
  $region20: #{cross_entropy_loss.1} parent=0 // pred_region
    _
  $region21: #{cross_entropy_loss.1} parent=0 // pred_fallthru
    _
  // Predicated region
  $region22: #{cross_entropy_loss.1} parent=0 // pred_check
    _
  $region23: #{cross_entropy_loss.1} parent=0 // pred_check_branch
    %120 = sbr.rel (0) target = $region25
  $region24: #{cross_entropy_loss.1} parent=0 // pred_region
    _
  $region25: #{cross_entropy_loss.1} parent=0 // pred_fallthru
    _
  // Predicated region
  $region26: #{cross_entropy_loss.1} parent=0 // pred_check
    _
  $region27: #{cross_entropy_loss.1} parent=0 // pred_check_branch
    %122 = sbr.rel (0) target = $region29
  $region28: #{cross_entropy_loss.1} parent=0 // pred_region
    _
  $region29: #{cross_entropy_loss.1} parent=0 // pred_fallthru
    _
  // Predicated region
  $region30: #{cross_entropy_loss.1} parent=0 // pred_check
    _
  $region31: #{cross_entropy_loss.1} parent=0 // pred_check_branch
    %124 = sbr.rel (0) target = $region33
  $region32: #{cross_entropy_loss.1} parent=0 // pred_region
    _
  $region33: #{cross_entropy_loss.1} parent=0 // pred_fallthru
    _

</llo_original>
